<compile_context>
chip_gen: v7x
topology: tpu7x:2x2x1
jax: 0.10.0
libtpu: 0.0.40
codegen_flags: <defaults>
</compile_context>

<pallas_src>
import jax
import jax.numpy as jnp
from jax.experimental import pallas as pl
from jax.experimental.pallas import tpu as pltpu

_MIB = 1 << 20


# ---------------------------------------------------------------------------
# Kernels
# ---------------------------------------------------------------------------
def _mlp_kernel_fused(x_ref, w13_ref, w2_ref, o_ref):
    """Whole-hidden pass: weights resident in VMEM, no accumulator needed."""
    hidden = w2_ref.shape[0]
    xb = x_ref[...].astype(w13_ref.dtype)          # in-kernel cast (VALU filler)
    h13 = jnp.dot(xb, w13_ref[...], preferred_element_type=jnp.float32)
    h1 = h13[:, :hidden]
    h3 = h13[:, hidden:]
    h = (h1 * jax.nn.sigmoid(h1)) * h3             # SiLU gate in f32 (EUP sigmoid)
    o_ref[...] = jnp.dot(h.astype(w2_ref.dtype), w2_ref[...],
                         preferred_element_type=jnp.float32).astype(o_ref.dtype)
    # TODO(synk): training-mode nn.Dropout would need pltpu.prng_seed /
    # pltpu.prng_random_bits masking here; eval-mode dropout is an identity.


def _mlp_kernel_tiled_f32out(x_ref, w13_ref, w2_ref, o_ref):
    """Hidden-tiled reduction, accumulating directly into the f32 output."""
    n = pl.program_id(1)
    tn = w2_ref.shape[0]

    @pl.when(n == 0)
    def _init():
        o_ref[...] = jnp.zeros_like(o_ref)

    xb = x_ref[...].astype(w13_ref.dtype)
    h13 = jnp.dot(xb, w13_ref[...], preferred_element_type=jnp.float32)
    h1 = h13[:, :tn]
    h3 = h13[:, tn:]
    h = (h1 * jax.nn.sigmoid(h1)) * h3
    o_ref[...] += jnp.dot(h.astype(w2_ref.dtype), w2_ref[...],
                          preferred_element_type=jnp.float32)


def _mlp_kernel_tiled_acc(x_ref, w13_ref, w2_ref, o_ref, acc_ref):
    """Hidden-tiled reduction with an f32 scratch accumulator (non-f32 out)."""
    n = pl.program_id(1)
    tn = w2_ref.shape[0]

    @pl.when(n == 0)
    def _init():
        acc_ref[...] = jnp.zeros_like(acc_ref)

    xb = x_ref[...].astype(w13_ref.dtype)
    h13 = jnp.dot(xb, w13_ref[...], preferred_element_type=jnp.float32)
    h1 = h13[:, :tn]
    h3 = h13[:, tn:]
    h = (h1 * jax.nn.sigmoid(h1)) * h3
    acc_ref[...] += jnp.dot(h.astype(w2_ref.dtype), w2_ref[...],
                            preferred_element_type=jnp.float32)

    @pl.when(n == pl.num_programs(1) - 1)
    def _finalize():
        o_ref[...] = acc_ref[...].astype(o_ref.dtype)


# ---------------------------------------------------------------------------
# Planning (generation-aware tile / VMEM selection)
# ---------------------------------------------------------------------------
def _tpu_generation():
    try:
        kind = jax.devices()[0].device_kind.lower()
    except Exception:
        return "unknown"
    if "v7" in kind:
        return "v7x"
    if "v6" in kind:
        return "v6e"
    if "v5" in kind and ("lite" in kind or "5e" in kind):
        return "v5e"
    if "v5" in kind:
        return "v5p"
    return "unknown"


_GEN_PARAMS = {
    #        tm_target, tn_target, vmem_cap_bytes
    "v5e": (256, 512, 100 * _MIB),   # knee ~240 rows; 128 MiB physical
    "v5p": (512, 512, 100 * _MIB),
    "v6e": (1024, 512, 110 * _MIB),  # worst flops/BW ratio -> biggest tm
    "v7x": (512, 256, 56 * _MIB),    # only 64 MiB/TC -> smaller tn, headroom
    "unknown": (256, 512, 56 * _MIB),
}


def _gen_params():
    gen = _tpu_generation()
    tm_t, tn_t, cap = _GEN_PARAMS[gen]
    try:  # optional refinement from hardware info; never raises out
        phys = getattr(pltpu.get_tpu_info(), "vmem_capacity_bytes", None)
        if phys:
            cap = min(cap, int(phys) - 8 * _MIB)
    except Exception:
        pass
    return gen, tm_t, tn_t, cap


def _pick_tile(n, target, multiple):
    """Largest t <= min(target, n) with n % t == 0 and (t % multiple == 0 or t == n)."""
    hi = min(target, n)
    for d in range(hi, 0, -1):
        if n % d == 0 and (d % multiple == 0 or d == n):
            return d
    return n


def _vmem_estimate(tm, tn, nt, dim, hidden, xb, ob, cb, use_acc):
    x_tiles = 2 * tm * dim * xb                       # double-buffered x
    out_tiles = 2 * tm * dim * ob                     # double-buffered out
    if nt == 1:
        w_tiles = 2 * (dim * 2 * hidden + hidden * dim) * cb
    else:
        w_tiles = 2 * (dim * 2 * tn + tn * dim) * cb
    acc = tm * dim * 4 if use_acc else 0
    inter = tm * 2 * tn * 4 + tm * tn * cb            # h13 (f32) + gated h
    return x_tiles + out_tiles + w_tiles + acc + inter


def plan_mlp(M, dim, hidden, x_dtype, out_dtype, compute_dtype=jnp.bfloat16):
    gen, tm_target, tn_target, vmem_cap = _gen_params()
    xb = jnp.dtype(x_dtype).itemsize
    ob = jnp.dtype(out_dtype).itemsize
    cb = jnp.dtype(compute_dtype).itemsize

    tm = _pick_tile(M, tm_target, 8)

    # Small-weight fast path: whole fused weights resident in VMEM.
    full_w = 2 * (dim * 2 * hidden + hidden * dim) * cb
    fast = full_w + 2 * tm * dim * (xb + ob) <= vmem_cap // 2
    tn = hidden if fast else _pick_tile(hidden, tn_target, 128)
    nt = hidden // tn
    use_acc = (nt > 1) and (jnp.dtype(out_dtype) != jnp.float32)

    # Shrink tm until the tiling fits the generation's VMEM budget.
    headroom = 8 * _MIB
    while (_vmem_estimate(tm, tn, nt, dim, hidden, xb, ob, cb, use_acc)
           + headroom > vmem_cap) and tm > 8:
        new_tm = _pick_tile(M, max(8, tm // 2), 8)
        if new_tm == tm:
            break
        tm = new_tm

    est = _vmem_estimate(tm, tn, nt, dim, hidden, xb, ob, cb, use_acc)
    vmem_limit = int(max(32 * _MIB, min(est + headroom, vmem_cap)))
    return dict(tm=tm, tn=tn, nt=nt, fast=(nt == 1), use_acc=use_acc,
                vmem_limit=vmem_limit, gen=gen,
                compute_dtype=jnp.dtype(compute_dtype))


# ---------------------------------------------------------------------------
# One-time weight preparation (load time, NOT in the per-call path)
# ---------------------------------------------------------------------------
def prepare_mlp_weights(w1, w3, w2, plan):
    """Fuse w1/w3 column-tile-wise and cast weights to the compute dtype once."""
    dim, hidden = w1.shape
    tn, nt = plan["tn"], plan["nt"]
    cdt = plan["compute_dtype"]
    # Tile n of w13 (width 2*tn) is [w1[:, n*tn:(n+1)*tn] | w3[:, n*tn:(n+1)*tn]].
    w13 = jnp.concatenate(
        [w1.reshape(dim, nt, tn), w3.reshape(dim, nt, tn)], axis=-1
    ).reshape(dim, 2 * hidden).astype(cdt)
    return w13, w2.astype(cdt)


# ---------------------------------------------------------------------------
# Per-call forward
# ---------------------------------------------------------------------------
def swiglu_mlp(x, w13, w2c, plan):
    """x: (M, dim) native dtype; w13: (dim, 2*hidden) pre-fused compute dtype;
    w2c: (hidden, dim) compute dtype. Returns (M, dim) in x.dtype."""
    M, dim = x.shape
    hidden = w2c.shape[0]
    tm, tn, nt = plan["tm"], plan["tn"], plan["nt"]
    out_dtype = x.dtype
    assert M % tm == 0 and hidden % tn == 0

    cb = jnp.dtype(plan["compute_dtype"]).itemsize
    xb = jnp.dtype(x.dtype).itemsize
    ob = jnp.dtype(out_dtype).itemsize
    w_factor = 1 if nt == 1 else pl.cdiv(M, tm)     # weights re-streamed per M tile
    cost = pl.CostEstimate(
        flops=6 * M * dim * hidden,
        transcendentals=M * hidden,
        bytes_accessed=(M * dim * xb + M * dim * ob
                        + w_factor * (dim * 2 * hidden + hidden * dim) * cb),
    )

    if nt == 1:
        # Fast path: whole weights resident, no reduction axis, no accumulator.
        return pl.pallas_call(
            _mlp_kernel_fused,
            out_shape=jax.ShapeDtypeStruct((M, dim), out_dtype),
            grid_spec=pltpu.PrefetchScalarGridSpec(
                num_scalar_prefetch=0,
                grid=(M // tm,),
                in_specs=[
                    pl.BlockSpec((tm, dim), lambda i: (i, 0)),
                    pl.BlockSpec((dim, 2 * hidden), lambda i: (0, 0)),
                    pl.BlockSpec((hidden, dim), lambda i: (0, 0)),
                ],
                out_specs=pl.BlockSpec((tm, dim), lambda i: (i, 0)),
            ),
            compiler_params=pltpu.CompilerParams(
                dimension_semantics=("parallel",),
                vmem_limit_bytes=plan["vmem_limit"]),
            cost_estimate=cost,
        )(x, w13, w2c)

    # Tiled path: hidden is the (last, "arbitrary") reduction axis.
    in_specs = [
        pl.BlockSpec((tm, dim), lambda i, n: (i, 0)),       # x resident across n
        pl.BlockSpec((dim, 2 * tn), lambda i, n: (0, n)),
        pl.BlockSpec((tn, dim), lambda i, n: (n, 0)),
    ]
    out_spec = pl.BlockSpec((tm, dim), lambda i, n: (i, 0))
    if plan["use_acc"]:
        kernel, scratch = _mlp_kernel_tiled_acc, [pltpu.VMEM((tm, dim), jnp.float32)]
    else:
        kernel, scratch = _mlp_kernel_tiled_f32out, []
    return pl.pallas_call(
        kernel,
        out_shape=jax.ShapeDtypeStruct((M, dim), out_dtype),
        grid_spec=pltpu.PrefetchScalarGridSpec(
            num_scalar_prefetch=0,
            grid=(M // tm, nt),
            in_specs=in_specs,
            out_specs=out_spec,
            scratch_shapes=scratch,
        ),
        compiler_params=pltpu.CompilerParams(
            dimension_semantics=("parallel", "arbitrary"),
            vmem_limit_bytes=plan["vmem_limit"]),
        cost_estimate=cost,
    )(x, w13, w2c)


def make_hidden_dim(dim, hidden_dim, multiple_of):
    if hidden_dim is None:
        hidden_dim = dim * 4
        hidden_dim = int(2 * hidden_dim / 3)
        hidden_dim = multiple_of * ((hidden_dim + multiple_of - 1) // multiple_of)
    return hidden_dim


if __name__ == "__main__":
    # Module config: dim=128, hidden_dim=None -> derived, multiple_of=128, dropout=0.0
    dim = 128
    multiple_of = 128
    hidden_dim = make_hidden_dim(dim, None, multiple_of)   # -> 384

    batch, seq = 2, 8
    key = jax.random.PRNGKey(0)
    kx, k1, k2, k3 = jax.random.split(key, 4)

    # Parameters stored as (in, out), i.e. PyTorch weight.T
    w1 = jax.random.normal(k1, (dim, hidden_dim), jnp.float32) / jnp.sqrt(dim)
    w3 = jax.random.normal(k3, (dim, hidden_dim), jnp.float32) / jnp.sqrt(dim)
    w2 = jax.random.normal(k2, (hidden_dim, dim), jnp.float32) / jnp.sqrt(hidden_dim)

    x = jax.random.normal(kx, (batch, seq, dim), jnp.float32)
    x2d = x.reshape(batch * seq, dim)
    M = x2d.shape[0]

    # One-time plan + weight preparation (load time, not per forward call).
    plan = plan_mlp(M, dim, hidden_dim, x2d.dtype, x2d.dtype)
    w13, w2c = prepare_mlp_weights(w1, w3, w2, plan)
    jax.block_until_ready((w13, w2c))

    out2d = swiglu_mlp(x2d, w13, w2c, plan)
    out = out2d.reshape(batch, seq, dim)
    jax.block_until_ready(out)

    # Reference mirroring kernel precision: bf16 matmul inputs, f32 accumulate,
    # gate computed in f32.
    def bf(a):
        return a.astype(jnp.bfloat16).astype(jnp.float32)

    h1 = bf(x2d) @ bf(w1)
    h3 = bf(x2d) @ bf(w3)
    h = (h1 * jax.nn.sigmoid(h1)) * h3
    ref = (bf(h) @ bf(w2)).reshape(batch, seq, dim)
    assert jnp.allclose(out, ref, atol=1e-2, rtol=1e-2), "mismatch vs reference"

    print("KERNEL_OK")
</pallas_src>

<mosaic_0001>
module attributes {stable_mosaic.version = 11 : i64} {
  func.func @_mlp_kernel_fused(%arg0: i32, %arg1: memref<16x128xf32, #tpu.memory_space<vmem>>, %arg2: memref<128x768xbf16, #tpu.memory_space<vmem>>, %arg3: memref<384x128xbf16, #tpu.memory_space<vmem>>, %arg4: memref<16x128xf32, #tpu.memory_space<vmem>>) attributes {dimension_semantics = [#tpu.dimension_semantics<parallel>], iteration_bounds = array<i64: 1>, scalar_prefetch = 0 : i64, scratch_operands = 0 : i64, tpu.core_type = #tpu.core_type<tc>, window_params = [{transform_indices = @transform_0, window_bounds = array<i64: 16, 128>}, {pipeline_mode = #tpu.pipeline_mode<synchronous>, transform_indices = @transform_1, window_bounds = array<i64: 128, 768>}, {pipeline_mode = #tpu.pipeline_mode<synchronous>, transform_indices = @transform_2, window_bounds = array<i64: 384, 128>}, {transform_indices = @transform_3, window_bounds = array<i64: 16, 128>}]} {
    %c0 = arith.constant 0 : index
    %c0_0 = arith.constant 0 : index
    %0 = vector.load %arg1[%c0, %c0_0] : memref<16x128xf32, #tpu.memory_space<vmem>>, vector<16x128xf32>
    %1 = arith.truncf %0 : vector<16x128xf32> to vector<16x128xbf16>
    %c0_1 = arith.constant 0 : index
    %c0_2 = arith.constant 0 : index
    %2 = vector.load %arg2[%c0_1, %c0_2] : memref<128x768xbf16, #tpu.memory_space<vmem>>, vector<128x768xbf16>
    %cst = arith.constant dense<0.000000e+00> : vector<16x768xf32>
    %3 = tpu.matmul %1, %2, %cst {dimension_numbers = #tpu.dot_dimension_numbers<[1], [0], [0], [1], [0, 0, 1, 1], [], []>} : vector<16x128xbf16>, vector<128x768xbf16>, vector<16x768xf32> -> vector<16x768xf32>
    %4 = vector.extract_strided_slice %3 {offsets = [0, 0], sizes = [16, 384], strides = [1, 1]} : vector<16x768xf32> to vector<16x384xf32>
    %5 = vector.extract_strided_slice %3 {offsets = [0, 384], sizes = [16, 384], strides = [1, 1]} : vector<16x768xf32> to vector<16x384xf32>
    %6 = arith.negf %4 : vector<16x384xf32>
    %7 = math.exp %6 : vector<16x384xf32>
    %cst_3 = arith.constant 1.000000e+00 : f32
    %8 = vector.broadcast %cst_3 : f32 to vector<16x384xf32>
    %9 = arith.addf %8, %7 : vector<16x384xf32>
    %10 = arith.divf %8, %9 : vector<16x384xf32>
    %11 = arith.mulf %4, %10 : vector<16x384xf32>
    %12 = arith.mulf %11, %5 : vector<16x384xf32>
    %13 = arith.truncf %12 : vector<16x384xf32> to vector<16x384xbf16>
    %c0_4 = arith.constant 0 : index
    %c0_5 = arith.constant 0 : index
    %14 = vector.load %arg3[%c0_4, %c0_5] : memref<384x128xbf16, #tpu.memory_space<vmem>>, vector<384x128xbf16>
    %cst_6 = arith.constant dense<0.000000e+00> : vector<16x128xf32>
    %15 = tpu.matmul %13, %14, %cst_6 {dimension_numbers = #tpu.dot_dimension_numbers<[1], [0], [0], [1], [0, 0, 1, 1], [], []>} : vector<16x384xbf16>, vector<384x128xbf16>, vector<16x128xf32> -> vector<16x128xf32>
    %c0_7 = arith.constant 0 : index
    %c0_8 = arith.constant 0 : index
    %16 = vector.load %arg4[%c0_7, %c0_8] : memref<16x128xf32, #tpu.memory_space<vmem>>, vector<16x128xf32>
    tpu.vector_store %arg4[%c0_7, %c0_8], %15 {strides = array<i32>} : memref<16x128xf32, #tpu.memory_space<vmem>>, vector<16x128xf32>,
    return
  }
  func.func @transform_0(%arg0: i32) -> (i32, i32) {
    %c0_i32 = arith.constant 0 : i32
    %c0_i32_0 = arith.constant 0 : i32
    return %arg0, %c0_i32 : i32, i32
  }
  func.func @transform_1(%arg0: i32) -> (i32, i32) {
    %c0_i32 = arith.constant 0 : i32
    %c0_i32_0 = arith.constant 0 : i32
    %c0_i32_1 = arith.constant 0 : i32
    return %c0_i32, %c0_i32_0 : i32, i32
  }
  func.func @transform_2(%arg0: i32) -> (i32, i32) {
    %c0_i32 = arith.constant 0 : i32
    %c0_i32_0 = arith.constant 0 : i32
    %c0_i32_1 = arith.constant 0 : i32
    return %c0_i32, %c0_i32_0 : i32, i32
  }
  func.func @transform_3(%arg0: i32) -> (i32, i32) {
    %c0_i32 = arith.constant 0 : i32
    %c0_i32_0 = arith.constant 0 : i32
    return %arg0, %c0_i32 : i32, i32
  }
}

</mosaic_0001>

<llo_original>
// kernel: tpu_custom_call.1
$region0: #{tpu_custom_call.1}
  #allocation0 [shape = 'u32[]', space=smem, size = 0x4, offset = 0x4, fixed_abs, tag = 'smem constant byte address 0x4 - core index']
  #allocation1 [shape = 'u32[144,128]{1,0:T(1,128)}', space=vmem, size = 0x12000, scoped, tag = 'internal scratch']
  %s0 = inlined_call_operand.hbm [shape: f32[16,128], index: 0, kind: input, shape index: {}]
  %s1 = inlined_call_operand.hbm [shape: bf16[128,768], index: 1, kind: input, shape index: {}]
  %s2 = inlined_call_operand.hbm [shape: bf16[384,128], index: 2, kind: input, shape index: {}]
  %s3 = inlined_call_operand.hbm [shape: f32[16,128], index: 3, kind: output, shape index: {}]
  %s4 = sld [smem:[#allocation0]]
  $region34: #{tpu_custom_call.1} parent=0
    _
  %s6 = ssub.s32 1, %s4
  %s7 = scalar_select 0, %s6, %s4
  $region1: #{tpu_custom_call.1} parent=0
    #allocation2 [shape = 'u8[8192]{0}', space=vmem, size = 0x2000, scoped, tag = 'input window, operand 0, single buffered']
    #allocation3 [shape = 's32[1]{0}', space=sflag, size = 0x4, scoped, tag = 'scoped memory for tpu_custom_call.1']
    #allocation4 [shape = 's32[1]{0}', space=sflag, size = 0x4, scoped, tag = 'scoped memory for tpu_custom_call.1']
    #allocation5 [shape = 'u8[196608]{0}', space=vmem, size = 0x30000, scoped, tag = 'input window, operand 1, single buffered']
    #allocation6 [shape = 's32[1]{0}', space=sflag, size = 0x4, scoped, tag = 'scoped memory for tpu_custom_call.1']
    #allocation7 [shape = 'u8[98304]{0}', space=vmem, size = 0x18000, scoped, tag = 'input window, operand 2, single buffered']
    #allocation8 [shape = 'u8[8192]{0}', space=vmem, size = 0x2000, scoped, tag = 'output window, operand 0, single buffered']
    %8 = vsyncpa [#allocation3], 0
    %9 = vsyncpa [#allocation6], 0
    %10 = vsyncpa [#allocation4], 0
    // Predicated region
    $region2: #{tpu_custom_call.1} parent=1 // pred_check
      _
    $region3: #{tpu_custom_call.1} parent=1 // pred_check_branch
      %12 = sbr.rel (0) target = $region5
    $region4: #{tpu_custom_call.1} parent=1 // pred_region
      %s14 = ssub.s32 256, 256
      %15 = vsyncadd [#allocation3], %s14
      %s16 = sshll.u32 [#allocation2], 4
      %s17 = int_to_ptr.vmem [resolvable:$true] %s16
      %22 = dma.hbm_to_vmem [thread:$0]  %s0, 256, %s17, [#allocation3], 128, 128, 8
    $region5: #{tpu_custom_call.1} parent=1 // pred_fallthru
      _
    // Predicated region
    $region6: #{tpu_custom_call.1} parent=1 // pred_check
      _
    $region7: #{tpu_custom_call.1} parent=1 // pred_check_branch
      %24 = sbr.rel (0) target = $region9
    $region8: #{tpu_custom_call.1} parent=1 // pred_region
      %s26 = ssub.s32 6144, 6144
      %27 = vsyncadd [#allocation6], %s26
      %s28 = sshll.u32 [#allocation5], 4
      %s29 = int_to_ptr.vmem [resolvable:$true] %s28
      %34 = dma.hbm_to_vmem [thread:$0]  %s1, 6144, %s29, [#allocation6], 384, 384, 24
    $region9: #{tpu_custom_call.1} parent=1 // pred_fallthru
      _
    // Predicated region
    $region10: #{tpu_custom_call.1} parent=1 // pred_check
      _
    $region11: #{tpu_custom_call.1} parent=1 // pred_check_branch
      %36 = sbr.rel (0) target = $region13
    $region12: #{tpu_custom_call.1} parent=1 // pred_region
      %s38 = ssub.s32 3072, 3072
      %39 = vsyncadd [#allocation6], %s38
      %s40 = sshll.u32 [#allocation7], 4
      %s41 = int_to_ptr.vmem [resolvable:$true] %s40
      %46 = dma.hbm_to_vmem [thread:$0]  %s2, 3072, %s41, [#allocation6], 64, 64, 4
    $region13: #{tpu_custom_call.1} parent=1 // pred_fallthru
      _
    // Predicated region
    $region14: #{tpu_custom_call.1} parent=1 // pred_check
      _
    $region15: #{tpu_custom_call.1} parent=1 // pred_check_branch
      %48 = sbr.rel (0) target = $region17
    $region16: #{tpu_custom_call.1} parent=1 // pred_region
      %49 = dma.done [#allocation3], 256
    $region17: #{tpu_custom_call.1} parent=1 // pred_fallthru
      _
    // Predicated region
    $region18: #{tpu_custom_call.1} parent=1 // pred_check
      _
    $region19: #{tpu_custom_call.1} parent=1 // pred_check_branch
      %51 = sbr.rel (0) target = $region21
    $region20: #{tpu_custom_call.1} parent=1 // pred_region
      %52 = dma.done [#allocation6], 6144
    $region21: #{tpu_custom_call.1} parent=1 // pred_fallthru
      _
    // Predicated region
    $region22: #{tpu_custom_call.1} parent=1 // pred_check
      _
    $region23: #{tpu_custom_call.1} parent=1 // pred_check_branch
      %54 = sbr.rel (0) target = $region25
    $region24: #{tpu_custom_call.1} parent=1 // pred_region
      %55 = dma.done [#allocation6], 3072
    $region25: #{tpu_custom_call.1} parent=1 // pred_fallthru
      _
    %v57 = vld [vmem:[#allocation2] sm:$0xff]
    %v58 = vld [vmem:[#allocation2 + $0x8] sm:$0xff]
    %v59 = vpack.c.bf16 %v58, %v57
    %v60 = vld [vmem:[#allocation5] sm:$0xff]
    %v61 = vld [vmem:[#allocation5 + $0x8] sm:$0xff]
    %v62 = vld [vmem:[#allocation5 + $0x10] sm:$0xff]
    %v63 = vld [vmem:[#allocation5 + $0x18] sm:$0xff]
    %v64 = vld [vmem:[#allocation5 + $0x20] sm:$0xff]
    %v65 = vld [vmem:[#allocation5 + $0x28] sm:$0xff]
    %v66 = vld [vmem:[#allocation5 + $0x30] sm:$0xff]
    %v67 = vld [vmem:[#allocation5 + $0x38] sm:$0xff]
    %v68 = vld [vmem:[#allocation5 + $0x40] sm:$0xff]
    %v69 = vld [vmem:[#allocation5 + $0x48] sm:$0xff]
    %v70 = vld [vmem:[#allocation5 + $0x50] sm:$0xff]
    %v71 = vld [vmem:[#allocation5 + $0x58] sm:$0xff]
    %v72 = vld [vmem:[#allocation5 + $0x60] sm:$0xff]
    %v73 = vld [vmem:[#allocation5 + $0x68] sm:$0xff]
    %v74 = vld [vmem:[#allocation5 + $0x70] sm:$0xff]
    %v75 = vld [vmem:[#allocation5 + $0x78] sm:$0xff]
    %v76 = vld [vmem:[#allocation5 + $0x80] sm:$0xff]
    %v77 = vld [vmem:[#allocation5 + $0x88] sm:$0xff]
    %v78 = vld [vmem:[#allocation5 + $0x90] sm:$0xff]
    %v79 = vld [vmem:[#allocation5 + $0x98] sm:$0xff]
    %v80 = vld [vmem:[#allocation5 + $0xa0] sm:$0xff]
    %v81 = vld [vmem:[#allocation5 + $0xa8] sm:$0xff]
    %v82 = vld [vmem:[#allocation5 + $0xb0] sm:$0xff]
    %v83 = vld [vmem:[#allocation5 + $0xb8] sm:$0xff]
    %v84 = vld [vmem:[#allocation5 + $0xc0] sm:$0xff]
    %v85 = vld [vmem:[#allocation5 + $0xc8] sm:$0xff]
    %v86 = vld [vmem:[#allocation5 + $0xd0] sm:$0xff]
    %v87 = vld [vmem:[#allocation5 + $0xd8] sm:$0xff]
    %v88 = vld [vmem:[#allocation5 + $0xe0] sm:$0xff]
    %v89 = vld [vmem:[#allocation5 + $0xe8] sm:$0xff]
    %v90 = vld [vmem:[#allocation5 + $0xf0] sm:$0xff]
    %v91 = vld [vmem:[#allocation5 + $0xf8] sm:$0xff]
    %v92 = vld [vmem:[#allocation5 + $0x100] sm:$0xff]
    %v93 = vld [vmem:[#allocation5 + $0x108] sm:$0xff]
    %v94 = vld [vmem:[#allocation5 + $0x110] sm:$0xff]
    %v95 = vld [vmem:[#allocation5 + $0x118] sm:$0xff]
    %v96 = vld [vmem:[#allocation5 + $0x120] sm:$0xff]
    %v97 = vld [vmem:[#allocation5 + $0x128] sm:$0xff]
    %v98 = vld [vmem:[#allocation5 + $0x130] sm:$0xff]
    %v99 = vld [vmem:[#allocation5 + $0x138] sm:$0xff]
    %v100 = vld [vmem:[#allocation5 + $0x140] sm:$0xff]
    %v101 = vld [vmem:[#allocation5 + $0x148] sm:$0xff]
    %v102 = vld [vmem:[#allocation5 + $0x150] sm:$0xff]
    %v103 = vld [vmem:[#allocation5 + $0x158] sm:$0xff]
    %v104 = vld [vmem:[#allocation5 + $0x160] sm:$0xff]
    %v105 = vld [vmem:[#allocation5 + $0x168] sm:$0xff]
    %v106 = vld [vmem:[#allocation5 + $0x170] sm:$0xff]
    %v107 = vld [vmem:[#allocation5 + $0x178] sm:$0xff]
    %v156 = vunpack.c.l.b16 %v60
    %v157 = vunpack.c.h.b16 %v60
    %v158 = vunpack.c.l.b16 %v61
    %v159 = vunpack.c.h.b16 %v61
    %v160 = vunpack.c.l.b16 %v62
    %v161 = vunpack.c.h.b16 %v62
    %v162 = vunpack.c.l.b16 %v63
    %v163 = vunpack.c.h.b16 %v63
    %v164 = vunpack.c.l.b16 %v64
    %v165 = vunpack.c.h.b16 %v64
    %v166 = vunpack.c.l.b16 %v65
    %v167 = vunpack.c.h.b16 %v65
    %v168 = vunpack.c.l.b16 %v66
    %v169 = vunpack.c.h.b16 %v66
    %v170 = vunpack.c.l.b16 %v67
    %v171 = vunpack.c.h.b16 %v67
    %v172 = vunpack.c.l.b16 %v68
    %v173 = vunpack.c.h.b16 %v68
    %v174 = vunpack.c.l.b16 %v69
    %v175 = vunpack.c.h.b16 %v69
    %v176 = vunpack.c.l.b16 %v70
    %v177 = vunpack.c.h.b16 %v70
    %v178 = vunpack.c.l.b16 %v71
    %v179 = vunpack.c.h.b16 %v71
    %v180 = vunpack.c.l.b16 %v72
    %v181 = vunpack.c.h.b16 %v72
    %v182 = vunpack.c.l.b16 %v73
    %v183 = vunpack.c.h.b16 %v73
    %v184 = vunpack.c.l.b16 %v74
    %v185 = vunpack.c.h.b16 %v74
    %v186 = vunpack.c.l.b16 %v75
    %v187 = vunpack.c.h.b16 %v75
    %v188 = vunpack.c.l.b16 %v76
    %v189 = vunpack.c.h.b16 %v76
    %v190 = vunpack.c.l.b16 %v77
    %v191 = vunpack.c.h.b16 %v77
    %v192 = vunpack.c.l.b16 %v78
    %v193 = vunpack.c.h.b16 %v78
    %v194 = vunpack.c.l.b16 %v79
    %v195 = vunpack.c.h.b16 %v79
    %v196 = vunpack.c.l.b16 %v80
    %v197 = vunpack.c.h.b16 %v80
    %v198 = vunpack.c.l.b16 %v81
    %v199 = vunpack.c.h.b16 %v81
    %v200 = vunpack.c.l.b16 %v82
    %v201 = vunpack.c.h.b16 %v82
    %v202 = vunpack.c.l.b16 %v83
    %v203 = vunpack.c.h.b16 %v83
    %v204 = vunpack.c.l.b16 %v84
    %v205 = vunpack.c.h.b16 %v84
    %v206 = vunpack.c.l.b16 %v85
    %v207 = vunpack.c.h.b16 %v85
    %v208 = vunpack.c.l.b16 %v86
    %v209 = vunpack.c.h.b16 %v86
    %v210 = vunpack.c.l.b16 %v87
    %v211 = vunpack.c.h.b16 %v87
    %v212 = vunpack.c.l.b16 %v88
    %v213 = vunpack.c.h.b16 %v88
    %v214 = vunpack.c.l.b16 %v89
    %v215 = vunpack.c.h.b16 %v89
    %v216 = vunpack.c.l.b16 %v90
    %v217 = vunpack.c.h.b16 %v90
    %v218 = vunpack.c.l.b16 %v91
    %v219 = vunpack.c.h.b16 %v91
    %v220 = vunpack.c.l.b16 %v92
    %v221 = vunpack.c.h.b16 %v92
    %v222 = vunpack.c.l.b16 %v93
    %v223 = vunpack.c.h.b16 %v93
    %v224 = vunpack.c.l.b16 %v94
    %v225 = vunpack.c.h.b16 %v94
    %v226 = vunpack.c.l.b16 %v95
    %v227 = vunpack.c.h.b16 %v95
    %v228 = vunpack.c.l.b16 %v96
    %v229 = vunpack.c.h.b16 %v96
    %v230 = vunpack.c.l.b16 %v97
    %v231 = vunpack.c.h.b16 %v97
    %v232 = vunpack.c.l.b16 %v98
    %v233 = vunpack.c.h.b16 %v98
    %v234 = vunpack.c.l.b16 %v99
    %v235 = vunpack.c.h.b16 %v99
    %v236 = vunpack.c.l.b16 %v100
    %v237 = vunpack.c.h.b16 %v100
    %v238 = vunpack.c.l.b16 %v101
    %v239 = vunpack.c.h.b16 %v101
    %v240 = vunpack.c.l.b16 %v102
    %v241 = vunpack.c.h.b16 %v102
    %v242 = vunpack.c.l.b16 %v103
    %v243 = vunpack.c.h.b16 %v103
    %v244 = vunpack.c.l.b16 %v104
    %v245 = vunpack.c.h.b16 %v104
    %v246 = vunpack.c.l.b16 %v105
    %v247 = vunpack.c.h.b16 %v105
    %v248 = vunpack.c.l.b16 %v106
    %v249 = vunpack.c.h.b16 %v106
    %v250 = vunpack.c.l.b16 %v107
    %v251 = vunpack.c.h.b16 %v107
    %v252 = vpack.c.b16 %v162, %v156
    %v253 = vpack.c.b16 %v163, %v157
    %v254 = vpack.c.b16 %v164, %v158
    %v255 = vpack.c.b16 %v165, %v159
    %v256 = vpack.c.b16 %v166, %v160
    %v257 = vpack.c.b16 %v167, %v161
    %v258 = vpack.c.b16 %v174, %v168
    %v259 = vpack.c.b16 %v175, %v169
    %v260 = vpack.c.b16 %v176, %v170
    %v261 = vpack.c.b16 %v177, %v171
    %v262 = vpack.c.b16 %v178, %v172
    %v263 = vpack.c.b16 %v179, %v173
    %v264 = vpack.c.b16 %v186, %v180
    %v265 = vpack.c.b16 %v187, %v181
    %v266 = vpack.c.b16 %v188, %v182
    %v267 = vpack.c.b16 %v189, %v183
    %v268 = vpack.c.b16 %v190, %v184
    %v269 = vpack.c.b16 %v191, %v185
    %v270 = vpack.c.b16 %v198, %v192
    %v271 = vpack.c.b16 %v199, %v193
    %v272 = vpack.c.b16 %v200, %v194
    %v273 = vpack.c.b16 %v201, %v195
    %v274 = vpack.c.b16 %v202, %v196
    %v275 = vpack.c.b16 %v203, %v197
    %v276 = vpack.c.b16 %v210, %v204
    %v277 = vpack.c.b16 %v211, %v205
    %v278 = vpack.c.b16 %v212, %v206
    %v279 = vpack.c.b16 %v213, %v207
    %v280 = vpack.c.b16 %v214, %v208
    %v281 = vpack.c.b16 %v215, %v209
    %v282 = vpack.c.b16 %v222, %v216
    %v283 = vpack.c.b16 %v223, %v217
    %v284 = vpack.c.b16 %v224, %v218
    %v285 = vpack.c.b16 %v225, %v219
    %v286 = vpack.c.b16 %v226, %v220
    %v287 = vpack.c.b16 %v227, %v221
    %v288 = vpack.c.b16 %v234, %v228
    %v289 = vpack.c.b16 %v235, %v229
    %v290 = vpack.c.b16 %v236, %v230
    %v291 = vpack.c.b16 %v237, %v231
    %v292 = vpack.c.b16 %v238, %v232
    %v293 = vpack.c.b16 %v239, %v233
    %v294 = vpack.c.b16 %v246, %v240
    %v295 = vpack.c.b16 %v247, %v241
    %v296 = vpack.c.b16 %v248, %v242
    %v297 = vpack.c.b16 %v249, %v243
    %v298 = vpack.c.b16 %v250, %v244
    %v299 = vpack.c.b16 %v251, %v245
    %348 = vmatprep.subr.bf16.mxu0 %v253
    %349 = vmatpush1.bf16.msra.mxu0 %v252
    %350 = vmatprep.subr.bf16.mxu0 %v259
    %351 = vmatpush1.bf16.msra.mxu0 %v258
    %352 = vmatprep.subr.bf16.mxu0 %v265
    %353 = vmatpush1.bf16.msra.mxu0 %v264
    %354 = vmatprep.subr.bf16.mxu0 %v271
    %355 = vmatpush1.bf16.msra.mxu0 %v270
    %356 = vmatprep.subr.bf16.mxu0 %v277
    %357 = vmatpush1.bf16.msra.mxu0 %v276
    %358 = vmatprep.subr.bf16.mxu0 %v283
    %359 = vmatpush1.bf16.msra.mxu0 %v282
    %360 = vmatprep.subr.bf16.mxu0 %v289
    %361 = vmatpush1.bf16.msra.mxu0 %v288
    %362 = vmatprep.subr.bf16.mxu0 %v295
    %363 = vmatpush1.bf16.msra.mxu0 %v294
    %364 = vmatprep.subr.bf16.mxu0 0
    %365 = vmatpush1.bf16.msra.mxu0 0
    %366 = vmatprep.subr.bf16.mxu0 0
    %367 = vmatpush1.bf16.msra.mxu0 0
    %368 = vmatprep.subr.bf16.mxu0 0
    %369 = vmatpush1.bf16.msra.mxu0 0
    %370 = vmatprep.subr.bf16.mxu0 0
    %371 = vmatpush1.bf16.msra.mxu0 0
    %372 = vmatprep.subr.bf16.mxu0 0
    %373 = vmatpush1.bf16.msra.mxu0 0
    %374 = vmatprep.subr.bf16.mxu0 0
    %375 = vmatpush1.bf16.msra.mxu0 0
    %376 = vmatprep.subr.bf16.mxu0 0
    %377 = vmatpush1.bf16.msra.mxu0 0
    %378 = vmatprep.subr.bf16.mxu0 0
    %379 = vmatpush1.bf16.msra.mxu0 0
    %380 = vmatprep.mubr.bf16.mxu0 0
    %381 = vmatmul.mubr.bf16.gmra.mrb[0].mxu0 %v59
    %v382 = vpop.f32.mrb[0].mxu0
    %v383 = vadd.f32 0.0, %v382
    %v384 = vpop.f32.mrb[0].mxu0
    %v385 = vadd.f32 0.0, %v384
    %v386 = vpop.f32.mrb[0].mxu0
    %v387 = vadd.f32 0.0, %v386
    %v388 = vpop.f32.mrb[0].mxu0
    %v389 = vadd.f32 0.0, %v388
    %390 = vdwg.mxu0
    %391 = vmatprep.subr.bf16.mxu0 %v255
    %392 = vmatpush1.bf16.msra.mxu0 %v254
    %393 = vmatprep.subr.bf16.mxu0 %v261
    %394 = vmatpush1.bf16.msra.mxu0 %v260
    %395 = vmatprep.subr.bf16.mxu0 %v267
    %396 = vmatpush1.bf16.msra.mxu0 %v266
    %397 = vmatprep.subr.bf16.mxu0 %v273
    %398 = vmatpush1.bf16.msra.mxu0 %v272
    %399 = vmatprep.subr.bf16.mxu0 %v279
    %400 = vmatpush1.bf16.msra.mxu0 %v278
    %401 = vmatprep.subr.bf16.mxu0 %v285
    %402 = vmatpush1.bf16.msra.mxu0 %v284
    %403 = vmatprep.subr.bf16.mxu0 %v291
    %404 = vmatpush1.bf16.msra.mxu0 %v290
    %405 = vmatprep.subr.bf16.mxu0 %v297
    %406 = vmatpush1.bf16.msra.mxu0 %v296
    %407 = vmatprep.subr.bf16.mxu0 0
    %408 = vmatpush1.bf16.msra.mxu0 0
    %409 = vmatprep.subr.bf16.mxu0 0
    %410 = vmatpush1.bf16.msra.mxu0 0
    %411 = vmatprep.subr.bf16.mxu0 0
    %412 = vmatpush1.bf16.msra.mxu0 0
    %413 = vmatprep.subr.bf16.mxu0 0
    %414 = vmatpush1.bf16.msra.mxu0 0
    %415 = vmatprep.subr.bf16.mxu0 0
    %416 = vmatpush1.bf16.msra.mxu0 0
    %417 = vmatprep.subr.bf16.mxu0 0
    %418 = vmatpush1.bf16.msra.mxu0 0
    %419 = vmatprep.subr.bf16.mxu0 0
    %420 = vmatpush1.bf16.msra.mxu0 0
    %421 = vmatprep.subr.bf16.mxu0 0
    %422 = vmatpush1.bf16.msra.mxu0 0
    %423 = vmatprep.mubr.bf16.mxu0 0
    %424 = vmatmul.mubr.bf16.gmra.mrb[0].mxu0 %v59
    %v425 = vpop.f32.mrb[0].mxu0
    %v426 = vadd.f32 0.0, %v425
    %v427 = vpop.f32.mrb[0].mxu0
    %v428 = vadd.f32 0.0, %v427
    %v429 = vpop.f32.mrb[0].mxu0
    %v430 = vadd.f32 0.0, %v429
    %v431 = vpop.f32.mrb[0].mxu0
    %v432 = vadd.f32 0.0, %v431
    %433 = vdwg.mxu0
    %434 = vmatprep.subr.bf16.mxu0 %v257
    %435 = vmatpush1.bf16.msra.mxu0 %v256
    %436 = vmatprep.subr.bf16.mxu0 %v263
    %437 = vmatpush1.bf16.msra.mxu0 %v262
    %438 = vmatprep.subr.bf16.mxu0 %v269
    %439 = vmatpush1.bf16.msra.mxu0 %v268
    %440 = vmatprep.subr.bf16.mxu0 %v275
    %441 = vmatpush1.bf16.msra.mxu0 %v274
    %442 = vmatprep.subr.bf16.mxu0 %v281
    %443 = vmatpush1.bf16.msra.mxu0 %v280
    %444 = vmatprep.subr.bf16.mxu0 %v287
    %445 = vmatpush1.bf16.msra.mxu0 %v286
    %446 = vmatprep.subr.bf16.mxu0 %v293
    %447 = vmatpush1.bf16.msra.mxu0 %v292
    %448 = vmatprep.subr.bf16.mxu0 %v299
    %449 = vmatpush1.bf16.msra.mxu0 %v298
    %450 = vmatprep.subr.bf16.mxu0 0
    %451 = vmatpush1.bf16.msra.mxu0 0
    %452 = vmatprep.subr.bf16.mxu0 0
    %453 = vmatpush1.bf16.msra.mxu0 0
    %454 = vmatprep.subr.bf16.mxu0 0
    %455 = vmatpush1.bf16.msra.mxu0 0
    %456 = vmatprep.subr.bf16.mxu0 0
    %457 = vmatpush1.bf16.msra.mxu0 0
    %458 = vmatprep.subr.bf16.mxu0 0
    %459 = vmatpush1.bf16.msra.mxu0 0
    %460 = vmatprep.subr.bf16.mxu0 0
    %461 = vmatpush1.bf16.msra.mxu0 0
    %462 = vmatprep.subr.bf16.mxu0 0
    %463 = vmatpush1.bf16.msra.mxu0 0
    %464 = vmatprep.subr.bf16.mxu0 0
    %465 = vmatpush1.bf16.msra.mxu0 0
    %466 = vmatprep.mubr.bf16.mxu0 0
    %467 = vmatmul.mubr.bf16.gmra.mrb[0].mxu0 %v59
    %v468 = vpop.f32.mrb[0].mxu0
    %v469 = vadd.f32 0.0, %v468
    %v470 = vpop.f32.mrb[0].mxu0
    %v471 = vadd.f32 0.0, %v470
    %v472 = vpop.f32.mrb[0].mxu0
    %v473 = vadd.f32 0.0, %v472
    %v474 = vpop.f32.mrb[0].mxu0
    %v475 = vadd.f32 0.0, %v474
    %476 = vdwg.mxu0
    %v477 = vxor.u32 %v383, 2147483648
    %v478 = vxor.u32 %v385, 2147483648
    %v479 = vxor.u32 %v426, 2147483648
    %v480 = vxor.u32 %v387, 2147483648
    %v481 = vxor.u32 %v389, 2147483648
    %v482 = vxor.u32 %v430, 2147483648
    %v483 = vmul.f32 %v477, 1.442695
    %v484 = vpow.pop %v483
    %v485 = vmul.f32 %v478, 1.442695
    %v486 = vpow.pop %v485
    %v487 = vmul.f32 %v479, 1.442695
    %v488 = vpow.pop %v487
    %v489 = vmul.f32 %v480, 1.442695
    %v490 = vpow.pop %v489
    %v491 = vmul.f32 %v481, 1.442695
    %v492 = vpow.pop %v491
    %v493 = vmul.f32 %v482, 1.442695
    %v494 = vpow.pop %v493
    %v495 = vadd.f32 %v484, 1.0
    %v496 = vadd.f32 %v486, 1.0
    %v497 = vadd.f32 %v488, 1.0
    %v498 = vadd.f32 %v490, 1.0
    %v499 = vadd.f32 %v492, 1.0
    %v500 = vadd.f32 %v494, 1.0
    %v501 = vrcp.pop %v495
    %v502 = vmul.f32 1.0, %v501
    %v503 = vrcp.pop %v496
    %v504 = vmul.f32 1.0, %v503
    %v505 = vrcp.pop %v497
    %v506 = vmul.f32 1.0, %v505
    %v507 = vrcp.pop %v498
    %v508 = vmul.f32 1.0, %v507
    %v509 = vrcp.pop %v499
    %v510 = vmul.f32 1.0, %v509
    %v511 = vrcp.pop %v500
    %v512 = vmul.f32 1.0, %v511
    %v513 = vmul.f32 %v383, %v502
    %v514 = vmul.f32 %v385, %v504
    %v515 = vmul.f32 %v426, %v506
    %v516 = vmul.f32 %v387, %v508
    %v517 = vmul.f32 %v389, %v510
    %v518 = vmul.f32 %v430, %v512
    %v519 = vmul.f32 %v513, %v428
    %v520 = vmul.f32 %v514, %v469
    %v521 = vmul.f32 %v515, %v471
    %v522 = vmul.f32 %v516, %v432
    %v523 = vmul.f32 %v517, %v473
    %v524 = vmul.f32 %v518, %v475
    %v525 = vpack.c.bf16 %v522, %v519
    %v526 = vpack.c.bf16 %v523, %v520
    %v527 = vpack.c.bf16 %v524, %v521
    %v528 = vld [vmem:[#allocation7] sm:$0xf]
    %v529 = vld [vmem:[#allocation7 + $0x4] sm:$0xf]
    %v530 = vld [vmem:[#allocation7 + $0x8] sm:$0xf]
    %v531 = vld [vmem:[#allocation7 + $0xc] sm:$0xf]
    %v532 = vld [vmem:[#allocation7 + $0x10] sm:$0xf]
    %v533 = vld [vmem:[#allocation7 + $0x14] sm:$0xf]
    %v534 = vld [vmem:[#allocation7 + $0x18] sm:$0xf]
    %v535 = vld [vmem:[#allocation7 + $0x1c] sm:$0xf]
    %v536 = vld [vmem:[#allocation7 + $0x20] sm:$0xf]
    %v537 = vld [vmem:[#allocation7 + $0x24] sm:$0xf]
    %v538 = vld [vmem:[#allocation7 + $0x28] sm:$0xf]
    %v539 = vld [vmem:[#allocation7 + $0x2c] sm:$0xf]
    %v540 = vld [vmem:[#allocation7 + $0x30] sm:$0xf]
    %v541 = vld [vmem:[#allocation7 + $0x34] sm:$0xf]
    %v542 = vld [vmem:[#allocation7 + $0x38] sm:$0xf]
    %v543 = vld [vmem:[#allocation7 + $0x3c] sm:$0xf]
    %v544 = vld [vmem:[#allocation7 + $0x40] sm:$0xf]
    %v545 = vld [vmem:[#allocation7 + $0x44] sm:$0xf]
    %v546 = vld [vmem:[#allocation7 + $0x48] sm:$0xf]
    %v547 = vld [vmem:[#allocation7 + $0x4c] sm:$0xf]
    %v548 = vld [vmem:[#allocation7 + $0x50] sm:$0xf]
    %v549 = vld [vmem:[#allocation7 + $0x54] sm:$0xf]
    %v550 = vld [vmem:[#allocation7 + $0x58] sm:$0xf]
    %v551 = vld [vmem:[#allocation7 + $0x5c] sm:$0xf]
    %v552 = vld [vmem:[#allocation7 + $0x60] sm:$0xf]
    %v553 = vld [vmem:[#allocation7 + $0x64] sm:$0xf]
    %v554 = vld [vmem:[#allocation7 + $0x68] sm:$0xf]
    %v555 = vld [vmem:[#allocation7 + $0x6c] sm:$0xf]
    %v556 = vld [vmem:[#allocation7 + $0x70] sm:$0xf]
    %v557 = vld [vmem:[#allocation7 + $0x74] sm:$0xf]
    %v558 = vld [vmem:[#allocation7 + $0x78] sm:$0xf]
    %v559 = vld [vmem:[#allocation7 + $0x7c] sm:$0xf]
    %v560 = vld [vmem:[#allocation7 + $0x80] sm:$0xf]
    %v561 = vld [vmem:[#allocation7 + $0x84] sm:$0xf]
    %v562 = vld [vmem:[#allocation7 + $0x88] sm:$0xf]
    %v563 = vld [vmem:[#allocation7 + $0x8c] sm:$0xf]
    %v564 = vld [vmem:[#allocation7 + $0x90] sm:$0xf]
    %v565 = vld [vmem:[#allocation7 + $0x94] sm:$0xf]
    %v566 = vld [vmem:[#allocation7 + $0x98] sm:$0xf]
    %v567 = vld [vmem:[#allocation7 + $0x9c] sm:$0xf]
    %v568 = vld [vmem:[#allocation7 + $0xa0] sm:$0xf]
    %v569 = vld [vmem:[#allocation7 + $0xa4] sm:$0xf]
    %v570 = vld [vmem:[#allocation7 + $0xa8] sm:$0xf]
    %v571 = vld [vmem:[#allocation7 + $0xac] sm:$0xf]
    %v572 = vld [vmem:[#allocation7 + $0xb0] sm:$0xf]
    %v573 = vld [vmem:[#allocation7 + $0xb4] sm:$0xf]
    %v574 = vld [vmem:[#allocation7 + $0xb8] sm:$0xf]
    %v575 = vld [vmem:[#allocation7 + $0xbc] sm:$0xf]
    %v624 = vunpack.c.l.b16 %v528
    %v625 = vunpack.c.l.b16 %v529
    %v626 = vunpack.c.l.b16 %v530
    %v627 = vunpack.c.l.b16 %v531
    %v628 = vunpack.c.l.b16 %v532
    %v629 = vunpack.c.l.b16 %v533
    %v630 = vunpack.c.l.b16 %v534
    %v631 = vunpack.c.l.b16 %v535
    %v632 = vunpack.c.l.b16 %v536
    %v633 = vunpack.c.l.b16 %v537
    %v634 = vunpack.c.l.b16 %v538
    %v635 = vunpack.c.l.b16 %v539
    %v636 = vunpack.c.l.b16 %v540
    %v637 = vunpack.c.l.b16 %v541
    %v638 = vunpack.c.l.b16 %v542
    %v639 = vunpack.c.l.b16 %v543
    %v640 = vunpack.c.l.b16 %v544
    %v641 = vunpack.c.l.b16 %v545
    %v642 = vunpack.c.l.b16 %v546
    %v643 = vunpack.c.l.b16 %v547
    %v644 = vunpack.c.l.b16 %v548
    %v645 = vunpack.c.l.b16 %v549
    %v646 = vunpack.c.l.b16 %v550
    %v647 = vunpack.c.l.b16 %v551
    %v648 = vunpack.c.l.b16 %v552
    %v649 = vunpack.c.l.b16 %v553
    %v650 = vunpack.c.l.b16 %v554
    %v651 = vunpack.c.l.b16 %v555
    %v652 = vunpack.c.l.b16 %v556
    %v653 = vunpack.c.l.b16 %v557
    %v654 = vunpack.c.l.b16 %v558
    %v655 = vunpack.c.l.b16 %v559
    %v656 = vunpack.c.l.b16 %v560
    %v657 = vunpack.c.l.b16 %v561
    %v658 = vunpack.c.l.b16 %v562
    %v659 = vunpack.c.l.b16 %v563
    %v660 = vunpack.c.l.b16 %v564
    %v661 = vunpack.c.l.b16 %v565
    %v662 = vunpack.c.l.b16 %v566
    %v663 = vunpack.c.l.b16 %v567
    %v664 = vunpack.c.l.b16 %v568
    %v665 = vunpack.c.l.b16 %v569
    %v666 = vunpack.c.l.b16 %v570
    %v667 = vunpack.c.l.b16 %v571
    %v668 = vunpack.c.l.b16 %v572
    %v669 = vunpack.c.l.b16 %v573
    %v670 = vunpack.c.l.b16 %v574
    %v671 = vunpack.c.l.b16 %v575
    %v672 = vpack.c.b16 %v625, %v624
    %v673 = vpack.c.b16 %v627, %v626
    %v674 = vpack.c.b16 %v629, %v628
    %v675 = vpack.c.b16 %v631, %v630
    %v676 = vpack.c.b16 %v633, %v632
    %v677 = vpack.c.b16 %v635, %v634
    %v678 = vpack.c.b16 %v637, %v636
    %v679 = vpack.c.b16 %v639, %v638
    %v680 = vpack.c.b16 %v641, %v640
    %v681 = vpack.c.b16 %v643, %v642
    %v682 = vpack.c.b16 %v645, %v644
    %v683 = vpack.c.b16 %v647, %v646
    %v684 = vpack.c.b16 %v649, %v648
    %v685 = vpack.c.b16 %v651, %v650
    %v686 = vpack.c.b16 %v653, %v652
    %v687 = vpack.c.b16 %v655, %v654
    %v688 = vpack.c.b16 %v657, %v656
    %v689 = vpack.c.b16 %v659, %v658
    %v690 = vpack.c.b16 %v661, %v660
    %v691 = vpack.c.b16 %v663, %v662
    %v692 = vpack.c.b16 %v665, %v664
    %v693 = vpack.c.b16 %v667, %v666
    %v694 = vpack.c.b16 %v669, %v668
    %v695 = vpack.c.b16 %v671, %v670
    %720 = vmatprep.subr.bf16.mxu0 0
    %721 = vmatpush1.bf16.msra.mxu0 %v672
    %722 = vmatprep.subr.bf16.mxu0 0
    %723 = vmatpush1.bf16.msra.mxu0 %v673
    %724 = vmatprep.subr.bf16.mxu0 0
    %725 = vmatpush1.bf16.msra.mxu0 %v674
    %726 = vmatprep.subr.bf16.mxu0 0
    %727 = vmatpush1.bf16.msra.mxu0 %v675
    %728 = vmatprep.subr.bf16.mxu0 0
    %729 = vmatpush1.bf16.msra.mxu0 %v676
    %730 = vmatprep.subr.bf16.mxu0 0
    %731 = vmatpush1.bf16.msra.mxu0 %v677
    %732 = vmatprep.subr.bf16.mxu0 0
    %733 = vmatpush1.bf16.msra.mxu0 %v678
    %734 = vmatprep.subr.bf16.mxu0 0
    %735 = vmatpush1.bf16.msra.mxu0 %v679
    %736 = vmatprep.subr.bf16.mxu0 0
    %737 = vmatpush1.bf16.msra.mxu0 %v680
    %738 = vmatprep.subr.bf16.mxu0 0
    %739 = vmatpush1.bf16.msra.mxu0 %v681
    %740 = vmatprep.subr.bf16.mxu0 0
    %741 = vmatpush1.bf16.msra.mxu0 %v682
    %742 = vmatprep.subr.bf16.mxu0 0
    %743 = vmatpush1.bf16.msra.mxu0 %v683
    %744 = vmatprep.subr.bf16.mxu0 0
    %745 = vmatpush1.bf16.msra.mxu0 %v684
    %746 = vmatprep.subr.bf16.mxu0 0
    %747 = vmatpush1.bf16.msra.mxu0 %v685
    %748 = vmatprep.subr.bf16.mxu0 0
    %749 = vmatpush1.bf16.msra.mxu0 %v686
    %750 = vmatprep.subr.bf16.mxu0 0
    %751 = vmatpush1.bf16.msra.mxu0 %v687
    %752 = vmatprep.mubr.bf16.mxu0 %v526
    %753 = vmatmul.mubr.bf16.gmra.mrb[0].mxu0 %v525
    %v754 = vpop.f32.mrb[0].mxu0
    %v755 = vadd.f32 0.0, %v754
    %v756 = vpop.f32.mrb[0].mxu0
    %v757 = vpop.f32.mrb[0].mxu0
    %v758 = vadd.f32 0.0, %v757
    %v759 = vpop.f32.mrb[0].mxu0
    %760 = vdwg.mxu0
    %761 = vmatprep.subr.bf16.mxu0 0
    %762 = vmatpush1.bf16.msra.mxu0 %v688
    %763 = vmatprep.subr.bf16.mxu0 0
    %764 = vmatpush1.bf16.msra.mxu0 %v689
    %765 = vmatprep.subr.bf16.mxu0 0
    %766 = vmatpush1.bf16.msra.mxu0 %v690
    %767 = vmatprep.subr.bf16.mxu0 0
    %768 = vmatpush1.bf16.msra.mxu0 %v691
    %769 = vmatprep.subr.bf16.mxu0 0
    %770 = vmatpush1.bf16.msra.mxu0 %v692
    %771 = vmatprep.subr.bf16.mxu0 0
    %772 = vmatpush1.bf16.msra.mxu0 %v693
    %773 = vmatprep.subr.bf16.mxu0 0
    %774 = vmatpush1.bf16.msra.mxu0 %v694
    %775 = vmatprep.subr.bf16.mxu0 0
    %776 = vmatpush1.bf16.msra.mxu0 %v695
    %777 = vmatprep.subr.bf16.mxu0 0
    %778 = vmatpush1.bf16.msra.mxu0 0
    %779 = vmatprep.subr.bf16.mxu0 0
    %780 = vmatpush1.bf16.msra.mxu0 0
    %781 = vmatprep.subr.bf16.mxu0 0
    %782 = vmatpush1.bf16.msra.mxu0 0
    %783 = vmatprep.subr.bf16.mxu0 0
    %784 = vmatpush1.bf16.msra.mxu0 0
    %785 = vmatprep.subr.bf16.mxu0 0
    %786 = vmatpush1.bf16.msra.mxu0 0
    %787 = vmatprep.subr.bf16.mxu0 0
    %788 = vmatpush1.bf16.msra.mxu0 0
    %789 = vmatprep.subr.bf16.mxu0 0
    %790 = vmatpush1.bf16.msra.mxu0 0
    %791 = vmatprep.subr.bf16.mxu0 0
    %792 = vmatpush1.bf16.msra.mxu0 0
    %793 = vmatprep.mubr.bf16.mxu0 0
    %794 = vmatmul.mubr.bf16.gmra.mrb[0].mxu0 %v527
    %v795 = vpop.f32.mrb[0].mxu0
    %v796 = vadd.f32 %v755, %v795
    %v797 = vpop.f32.mrb[0].mxu0
    %v798 = vpop.f32.mrb[0].mxu0
    %v799 = vadd.f32 %v758, %v798
    %v800 = vpop.f32.mrb[0].mxu0
    %801 = vdwg.mxu0
    %802 = vst [vmem:[#allocation8] sm:$0xff] %v796
    %803 = vst [vmem:[#allocation8 + $0x8] sm:$0xff] %v799
    // Predicated region
    $region26: #{tpu_custom_call.1} parent=1 // pred_check
      _
    $region27: #{tpu_custom_call.1} parent=1 // pred_check_branch
      %805 = sbr.rel (0) target = $region29
    $region28: #{tpu_custom_call.1} parent=1 // pred_region
      %s807 = ssub.s32 256, 256
      %808 = vsyncadd [#allocation4], %s807
      %s809 = sshll.u32 [#allocation8], 4
      %s810 = int_to_ptr.vmem [resolvable:$true] %s809
      %815 = dma.vmem_to_hbm [thread:$0]  %s810, 256, %s3, [#allocation4], 128, 128, 8
    $region29: #{tpu_custom_call.1} parent=1 // pred_fallthru
      _
    // Predicated region
    $region30: #{tpu_custom_call.1} parent=1 // pred_check
      _
    $region31: #{tpu_custom_call.1} parent=1 // pred_check_branch
      %817 = sbr.rel (0) target = $region33
    $region32: #{tpu_custom_call.1} parent=1 // pred_region
      %818 = dma.done [#allocation4], 256
    $region33: #{tpu_custom_call.1} parent=1 // pred_fallthru
      _
    %819 = vsyncpa [#allocation3], 1
    %820 = vsyncpa [#allocation6], 1
    %821 = vsyncpa [#allocation4], 1

</llo_original>
